<compile_context>
chip_gen: v7x
topology: tpu7x:2x2x1
jax: 0.10.0
libtpu: 0.0.40
codegen_flags: <defaults>
</compile_context>

<pallas_src>
import functools

import jax
import jax.numpy as jnp
from jax.experimental import pallas as pl
from jax.experimental.pallas import tpu as pltpu

NEG_SLOPE = 0.01      # nn.LeakyReLU default slope
ATT_SLOPE = 0.2       # PyG GATConv attention LeakyReLU slope
BN_EPS = 1e-5
NEG_INF = -1e30       # additive mask bias for non-edges
M_FLOOR = -1e20       # init of the running max (>> NEG_INF, << any real logit)


def _leaky(x, slope):
    # slope in (0, 1)  =>  leaky_relu(x) == max(x, slope * x)   (single VPU op)
    return jnp.maximum(x, slope * x)


def _round_up(x, m):
    return (x + m - 1) // m * m


def _hw_budget():
    """Generation-aware VMEM budget (v5e/v6e: 128 MiB, v7x: 64 MiB)."""
    try:
        cap = int(pltpu.get_tpu_info().vmem_capacity_bytes)
    except Exception:
        cap = 64 * 1024 * 1024          # conservative fallback (v7x per-core)
    big = cap >= 96 * 1024 * 1024
    vmem_limit = int(min(cap * 3 // 4, 100 * 1024 * 1024))
    return big, vmem_limit


def _choose_tiles(n, big):
    """Pick (TM, TN, N_pad) with TM | TN | N_pad, TM mult of 32, TN mult of 128."""
    tm_target = 512 if big else 256
    tn_target = 2048 if big else 1024
    tm = min(tm_target, _round_up(n, 128))        # multiple of 128 (>= int8 min tile)
    k = max(1, min(tn_target // tm, -(-n // tm)))
    tn = tm * k
    n_pad = _round_up(n, tn)
    return tm, tn, n_pad


# ---------------------------------------------------------------------------
# Stage 1: fused feature MLPs + BN (folded) + GAT-1 projection + attn logits
# ---------------------------------------------------------------------------
def _stage1_kernel(feat_ref, wnc_ref, bnc_ref, win_ref, bin_ref,
                   w1_ref, c1_ref, a1_ref, xp_ref, alpha1_ref):
    f32, bf16 = jnp.float32, jnp.bfloat16
    # fused num/cat MLPs (block-diagonal weight, bf16 operands) + LeakyReLU
    nc = _leaky(jnp.dot(feat_ref[...], wnc_ref[...], preferred_element_type=f32)
                + bnc_ref[...], NEG_SLOPE)
    # linear_relu_input (dropout is identity in eval)
    x = _leaky(jnp.dot(nc.astype(bf16), win_ref[...], preferred_element_type=f32)
               + bin_ref[...], NEG_SLOPE)
    # BatchNorm1d (eval) folded host-side into w1/c1:
    #   xp = BN(x) @ W_gat1 = x @ (scale * W_gat1) + shift @ W_gat1
    xp = jnp.dot(x.astype(bf16), w1_ref[...], preferred_element_type=f32) + c1_ref[...]
    # all per-head src/dst attention logits with one block-diagonal matmul
    alpha1_ref[...] = jnp.dot(xp, a1_ref[...], preferred_element_type=f32)
    xp_ref[...] = xp.astype(bf16)


# ---------------------------------------------------------------------------
# Stage 2: GAT layer 1 (4 heads), online softmax over column chunks
# ---------------------------------------------------------------------------
def _gat1_kernel(heads1, oc,
                 adj_ref, xpa_ref, asrcT_ref, adst_ref, b1_ref, w2_ref, a2_ref,
                 xp2_ref, alpha2_ref, m_sc, acc_sc):
    f32, bf16 = jnp.float32, jnp.bfloat16
    j = pl.program_id(1)
    ocp = oc + 1

    @pl.when(j == 0)
    def _():
        m_sc[...] = jnp.full(m_sc.shape, M_FLOOR, m_sc.dtype)
        acc_sc[...] = jnp.zeros(acc_sc.shape, acc_sc.dtype)

    # one additive mask bias per tile, shared by all heads (no i32 widen)
    bias = jnp.where(adj_ref[...] == 0, jnp.float32(NEG_INF), jnp.float32(0.0))
    a_dst = adst_ref[...]          # [TM, heads1] f32
    a_src = asrcT_ref[...]         # [heads1, TN] f32
    xpa = xpa_ref[...]             # [TN, heads1*(oc+1)] bf16 ([xp_h | 1] per head)

    for h in range(heads1):        # static unroll; temporaries stay [TM, TN]
        z = a_dst[:, h:h + 1] + a_src[h:h + 1, :]                  # [TM, TN]
        e = _leaky(z, ATT_SLOPE) + bias
        m_prev = m_sc[h]                                           # [TM, 1]
        m_new = jnp.maximum(m_prev, jnp.max(e, axis=1, keepdims=True))
        p = jnp.exp(e - m_new)                                     # masked -> exact 0
        # aggregation + denominator in one MXU matmul (extra ones column)
        contrib = jnp.dot(p.astype(bf16), xpa[:, h * ocp:(h + 1) * ocp],
                          preferred_element_type=f32)              # [TM, oc+1]
        corr = jnp.exp(m_prev - m_new)
        acc_sc[h] = corr * acc_sc[h] + contrib
        m_sc[h] = m_new

    @pl.when(j == pl.num_programs(1) - 1)
    def _():
        outs = []
        for h in range(heads1):
            blk = acc_sc[h]                                        # [TM, oc+1]
            inv = pl.reciprocal(blk[:, oc:oc + 1], approx=True)    # denom >= 1
            outs.append(blk[:, :oc] * inv)
        y = _leaky(jnp.concatenate(outs, axis=1) + b1_ref[...], NEG_SLOPE)
        # dropout -> identity (eval); project for GAT layer 2 + its attn logits
        xp2 = jnp.dot(y.astype(bf16), w2_ref[...], preferred_element_type=f32)
        alpha2_ref[...] = jnp.dot(xp2, a2_ref[...], preferred_element_type=f32)
        xp2_ref[...] = xp2.astype(bf16)


# ---------------------------------------------------------------------------
# Stage 3: GAT layer 2 (1 head), online softmax over column chunks
# ---------------------------------------------------------------------------
def _gat2_kernel(adj_ref, xpa_ref, asrcT_ref, adst_ref, b2_ref,
                 out_ref, m_sc, acc_sc):
    f32, bf16 = jnp.float32, jnp.bfloat16
    j = pl.program_id(1)
    H = out_ref.shape[1]

    @pl.when(j == 0)
    def _():
        m_sc[...] = jnp.full(m_sc.shape, M_FLOOR, m_sc.dtype)
        acc_sc[...] = jnp.zeros(acc_sc.shape, acc_sc.dtype)

    bias = jnp.where(adj_ref[...] == 0, jnp.float32(NEG_INF), jnp.float32(0.0))
    z = adst_ref[...] + asrcT_ref[...]                             # [TM, TN]
    e = _leaky(z, ATT_SLOPE) + bias
    m_prev = m_sc[...]                                             # [TM, 1]
    m_new = jnp.maximum(m_prev, jnp.max(e, axis=1, keepdims=True))
    p = jnp.exp(e - m_new)
    contrib = jnp.dot(p.astype(bf16), xpa_ref[...],
                      preferred_element_type=f32)                  # [TM, H+1]
    corr = jnp.exp(m_prev - m_new)
    acc_sc[...] = corr * acc_sc[...] + contrib
    m_sc[...] = m_new

    @pl.when(j == pl.num_programs(1) - 1)
    def _():
        acc = acc_sc[...]
        inv = pl.reciprocal(acc[:, H:H + 1], approx=True)
        out_ref[...] = acc[:, :H] * inv + b2_ref[...]


# ---------------------------------------------------------------------------
# Parameters / wrapper
# ---------------------------------------------------------------------------
def init_params(key, hidden_dim, num_prop_size=7, cat_prop_size=3, heads1=4):
    ks = jax.random.split(key, 16)
    h2 = hidden_dim // 2
    oc = hidden_dim // heads1

    def w(k, shape, scale=0.1):
        return (scale * jax.random.normal(k, shape)).astype(jnp.float32)

    return dict(
        w_num=w(ks[0], (num_prop_size, h2)), b_num=w(ks[1], (1, h2)),
        w_cat=w(ks[2], (cat_prop_size, h2)), b_cat=w(ks[3], (1, h2)),
        w_in=w(ks[4], (hidden_dim, hidden_dim)), b_in=w(ks[5], (1, hidden_dim)),
        bn_gamma=(1.0 + w(ks[6], (1, hidden_dim))), bn_beta=w(ks[7], (1, hidden_dim)),
        bn_mean=jnp.zeros((1, hidden_dim), jnp.float32),
        bn_var=jnp.ones((1, hidden_dim), jnp.float32),
        w_g1=w(ks[8], (hidden_dim, hidden_dim)),
        a1_src=w(ks[9], (heads1, oc)), a1_dst=w(ks[10], (heads1, oc)),
        b_g1=w(ks[11], (1, hidden_dim)),
        w_g2=w(ks[12], (hidden_dim, hidden_dim)),
        a2_src=w(ks[13], (1, hidden_dim)), a2_dst=w(ks[14], (1, hidden_dim)),
        b_g2=w(ks[15], (1, hidden_dim)),
    )


def bot_gat_encoder(num_prop, cat_prop, edge_index, params, hidden_dim, heads1=4):
    N = num_prop.shape[0]
    H = hidden_dim
    h2 = H // 2
    oc = H // heads1
    ocp = oc + 1
    n_num, n_cat = num_prop.shape[1], cat_prop.shape[1]
    K = n_num + n_cat
    K_pad = _round_up(K, 8)

    big, vmem_limit = _hw_budget()
    TM, TN, N_pad = _choose_tiles(N, big)
    n_i, n_j = N_pad // TM, N_pad // TN

    cparams1 = pltpu.CompilerParams(dimension_semantics=("parallel",),
                                    vmem_limit_bytes=vmem_limit)
    cparams2 = pltpu.CompilerParams(dimension_semantics=("parallel", "arbitrary"),
                                    vmem_limit_bytes=vmem_limit)

    # ---- host-side folding / packing (tiny, done once per call) ----
    feat = jnp.zeros((N_pad, K_pad), jnp.float32)
    feat = feat.at[:N, :n_num].set(num_prop.astype(jnp.float32))
    feat = feat.at[:N, n_num:K].set(cat_prop.astype(jnp.float32))
    feat = feat.astype(jnp.bfloat16)                     # bf16 MXU + half the DMA

    # block-diagonal fused weight for the two input MLPs
    w_nc = jnp.zeros((K_pad, H), jnp.float32)
    w_nc = w_nc.at[:n_num, :h2].set(params['w_num'])
    w_nc = w_nc.at[n_num:K, h2:].set(params['w_cat'])
    w_nc_b = w_nc.astype(jnp.bfloat16)
    b_nc = jnp.concatenate([params['b_num'], params['b_cat']], axis=1)

    # BatchNorm1d (eval, running stats) folded into the GAT-1 projection
    scale = params['bn_gamma'] / jnp.sqrt(params['bn_var'] + BN_EPS)    # [1, H]
    shift = params['bn_beta'] - params['bn_mean'] * scale               # [1, H]
    w1_eff = (scale.reshape(H, 1) * params['w_g1']).astype(jnp.bfloat16)
    c1 = jnp.dot(shift, params['w_g1'])                                 # [1, H]

    # block-diagonal per-head attention projections: alpha = xp @ A
    A1 = jnp.zeros((H, 2 * heads1), jnp.float32)
    for h in range(heads1):
        A1 = A1.at[h * oc:(h + 1) * oc, h].set(params['a1_src'][h])
        A1 = A1.at[h * oc:(h + 1) * oc, heads1 + h].set(params['a1_dst'][h])
    A2 = jnp.concatenate([params['a2_src'].T, params['a2_dst'].T], axis=1)  # [H, 2]

    w_in_b = params['w_in'].astype(jnp.bfloat16)
    w2_b = params['w_g2'].astype(jnp.bfloat16)

    # dense int8 adjacency (adj[dst, src] = 1) with self loops on all rows
    # (padded rows get a self loop too so their softmax denominator stays >= 1
    #  and no NaN/Inf can leak into valid rows through the aggregation matmul).
    src, dst = edge_index[0], edge_index[1]
    diag = jnp.arange(N_pad)
    adj = jnp.zeros((N_pad, N_pad), jnp.int8)
    adj = adj.at[dst, src].set(1)
    adj = adj.at[diag, diag].set(1)

    # ---- stage 1 ----
    xp, alpha1 = pl.pallas_call(
        _stage1_kernel,
        grid=(n_i,),
        in_specs=[pl.BlockSpec((TM, K_pad), lambda i: (i, 0)),
                  pl.BlockSpec((K_pad, H), lambda i: (0, 0)),
                  pl.BlockSpec((1, H), lambda i: (0, 0)),
                  pl.BlockSpec((H, H), lambda i: (0, 0)),
                  pl.BlockSpec((1, H), lambda i: (0, 0)),
                  pl.BlockSpec((H, H), lambda i: (0, 0)),
                  pl.BlockSpec((1, H), lambda i: (0, 0)),
                  pl.BlockSpec((H, 2 * heads1), lambda i: (0, 0))],
        out_specs=(pl.BlockSpec((TM, H), lambda i: (i, 0)),
                   pl.BlockSpec((TM, 2 * heads1), lambda i: (i, 0))),
        out_shape=(jax.ShapeDtypeStruct((N_pad, H), jnp.bfloat16),
                   jax.ShapeDtypeStruct((N_pad, 2 * heads1), jnp.float32)),
        compiler_params=cparams1,
    )(feat, w_nc_b, b_nc, w_in_b, params['b_in'], w1_eff, c1, A1)

    ones_col = jnp.ones((N_pad, 1), jnp.bfloat16)
    # per-head value matrix augmented with a ones column (matmul-folded denom)
    xp1_aug = jnp.concatenate(
        [jnp.concatenate([xp[:, h * oc:(h + 1) * oc], ones_col], axis=1)
         for h in range(heads1)], axis=1)                 # [N_pad, heads1*(oc+1)]
    a1_srcT = jnp.transpose(alpha1[:, :heads1])           # [heads1, N_pad]
    a1_dst = alpha1[:, heads1:2 * heads1]                 # [N_pad, heads1]

    # ---- stage 2: GAT layer 1 ----
    xp2, alpha2 = pl.pallas_call(
        functools.partial(_gat1_kernel, heads1, oc),
        grid=(n_i, n_j),
        in_specs=[pl.BlockSpec((TM, TN), lambda i, j: (i, j)),          # adj tile
                  pl.BlockSpec((TN, heads1 * ocp), lambda i, j: (j, 0)),  # [xp_h|1]
                  pl.BlockSpec((heads1, TN), lambda i, j: (0, j)),      # src logits
                  pl.BlockSpec((TM, heads1), lambda i, j: (i, 0)),      # dst logits
                  pl.BlockSpec((1, H), lambda i, j: (0, 0)),
                  pl.BlockSpec((H, H), lambda i, j: (0, 0)),
                  pl.BlockSpec((H, 2), lambda i, j: (0, 0))],
        out_specs=(pl.BlockSpec((TM, H), lambda i, j: (i, 0)),
                   pl.BlockSpec((TM, 2), lambda i, j: (i, 0))),
        out_shape=(jax.ShapeDtypeStruct((N_pad, H), jnp.bfloat16),
                   jax.ShapeDtypeStruct((N_pad, 2), jnp.float32)),
        scratch_shapes=[pltpu.VMEM((heads1, TM, 1), jnp.float32),       # running max
                        pltpu.VMEM((heads1, TM, ocp), jnp.float32)],    # acc + denom
        compiler_params=cparams2,
    )(adj, xp1_aug, a1_srcT, a1_dst, params['b_g1'], w2_b, A2)

    xp2_aug = jnp.concatenate([xp2, ones_col], axis=1)    # [N_pad, H+1]
    a2_srcT = jnp.transpose(alpha2[:, 0:1])               # [1, N_pad]
    a2_dst = alpha2[:, 1:2]                               # [N_pad, 1]

    # ---- stage 3: GAT layer 2 ----
    out = pl.pallas_call(
        _gat2_kernel,
        grid=(n_i, n_j),
        in_specs=[pl.BlockSpec((TM, TN), lambda i, j: (i, j)),
                  pl.BlockSpec((TN, H + 1), lambda i, j: (j, 0)),
                  pl.BlockSpec((1, TN), lambda i, j: (0, j)),
                  pl.BlockSpec((TM, 1), lambda i, j: (i, 0)),
                  pl.BlockSpec((1, H), lambda i, j: (0, 0))],
        out_specs=pl.BlockSpec((TM, H), lambda i, j: (i, 0)),
        out_shape=jax.ShapeDtypeStruct((N_pad, H), jnp.float32),
        scratch_shapes=[pltpu.VMEM((TM, 1), jnp.float32),
                        pltpu.VMEM((TM, H + 1), jnp.float32)],
        compiler_params=cparams2,
    )(adj, xp2_aug, a2_srcT, a2_dst, params['b_g2'])

    return out[:N]


if __name__ == "__main__":
    key = jax.random.PRNGKey(0)
    k_num, k_cat, k_src, k_dst, k_par = jax.random.split(key, 5)

    N, H, E = 16, 32, 40
    num_prop = jax.random.normal(k_num, (N, 7), dtype=jnp.float32)
    cat_prop = jax.random.normal(k_cat, (N, 3), dtype=jnp.float32)
    edge_index = jnp.stack([
        jax.random.randint(k_src, (E,), 0, N),
        jax.random.randint(k_dst, (E,), 0, N),
    ], axis=0)

    params = init_params(k_par, H)

    out = bot_gat_encoder(num_prop, cat_prop, edge_index, params, hidden_dim=H)
    out = jax.block_until_ready(out)
    assert out.shape == (N, H) and out.dtype == jnp.float32
    assert bool(jnp.all(jnp.isfinite(out)))
    print("KERNEL_OK")
</pallas_src>

<mosaic_0001>
module attributes {stable_mosaic.version = 11 : i64} {
  func.func @_stage1_kernel(%arg0: i32, %arg1: memref<128x16xbf16, #tpu.memory_space<vmem>>, %arg2: memref<16x32xbf16, #tpu.memory_space<vmem>>, %arg3: memref<1x32xf32, #tpu.memory_space<vmem>>, %arg4: memref<32x32xbf16, #tpu.memory_space<vmem>>, %arg5: memref<1x32xf32, #tpu.memory_space<vmem>>, %arg6: memref<32x32xbf16, #tpu.memory_space<vmem>>, %arg7: memref<1x32xf32, #tpu.memory_space<vmem>>, %arg8: memref<32x8xf32, #tpu.memory_space<vmem>>, %arg9: memref<128x32xbf16, #tpu.memory_space<vmem>>, %arg10: memref<128x8xf32, #tpu.memory_space<vmem>>) attributes {dimension_semantics = [#tpu.dimension_semantics<parallel>], iteration_bounds = array<i64: 1>, scalar_prefetch = 0 : i64, scratch_operands = 0 : i64, tpu.core_type = #tpu.core_type<tc>, window_params = [{transform_indices = @transform_0, window_bounds = array<i64: 128, 16>}, {pipeline_mode = #tpu.pipeline_mode<synchronous>, transform_indices = @transform_1, window_bounds = array<i64: 16, 32>}, {pipeline_mode = #tpu.pipeline_mode<synchronous>, transform_indices = @transform_2, window_bounds = array<i64: 1, 32>}, {pipeline_mode = #tpu.pipeline_mode<synchronous>, transform_indices = @transform_3, window_bounds = array<i64: 32, 32>}, {pipeline_mode = #tpu.pipeline_mode<synchronous>, transform_indices = @transform_4, window_bounds = array<i64: 1, 32>}, {pipeline_mode = #tpu.pipeline_mode<synchronous>, transform_indices = @transform_5, window_bounds = array<i64: 32, 32>}, {pipeline_mode = #tpu.pipeline_mode<synchronous>, transform_indices = @transform_6, window_bounds = array<i64: 1, 32>}, {pipeline_mode = #tpu.pipeline_mode<synchronous>, transform_indices = @transform_7, window_bounds = array<i64: 32, 8>}, {transform_indices = @transform_8, window_bounds = array<i64: 128, 32>}, {transform_indices = @transform_9, window_bounds = array<i64: 128, 8>}]} {
    %c0 = arith.constant 0 : index
    %c0_0 = arith.constant 0 : index
    %0 = vector.load %arg1[%c0, %c0_0] : memref<128x16xbf16, #tpu.memory_space<vmem>>, vector<128x16xbf16>
    %c0_1 = arith.constant 0 : index
    %c0_2 = arith.constant 0 : index
    %1 = vector.load %arg2[%c0_1, %c0_2] : memref<16x32xbf16, #tpu.memory_space<vmem>>, vector<16x32xbf16>
    %cst = arith.constant dense<0.000000e+00> : vector<128x32xf32>
    %2 = tpu.matmul %0, %1, %cst {dimension_numbers = #tpu.dot_dimension_numbers<[1], [0], [0], [1], [0, 0, 1, 1], [], []>} : vector<128x16xbf16>, vector<16x32xbf16>, vector<128x32xf32> -> vector<128x32xf32>
    %c0_3 = arith.constant 0 : index
    %c0_4 = arith.constant 0 : index
    %3 = vector.load %arg3[%c0_3, %c0_4] : memref<1x32xf32, #tpu.memory_space<vmem>>, vector<1x32xf32>
    %4 = vector.broadcast %3 : vector<1x32xf32> to vector<128x32xf32>
    %5 = arith.addf %2, %4 : vector<128x32xf32>
    %cst_5 = arith.constant 0.00999999977 : f32
    %6 = vector.broadcast %cst_5 : f32 to vector<128x32xf32>
    %7 = arith.mulf %6, %5 : vector<128x32xf32>
    %8 = arith.maximumf %5, %7 : vector<128x32xf32>
    %9 = arith.truncf %8 : vector<128x32xf32> to vector<128x32xbf16>
    %c0_6 = arith.constant 0 : index
    %c0_7 = arith.constant 0 : index
    %10 = vector.load %arg4[%c0_6, %c0_7] : memref<32x32xbf16, #tpu.memory_space<vmem>>, vector<32x32xbf16>
    %cst_8 = arith.constant dense<0.000000e+00> : vector<128x32xf32>
    %11 = tpu.matmul %9, %10, %cst_8 {dimension_numbers = #tpu.dot_dimension_numbers<[1], [0], [0], [1], [0, 0, 1, 1], [], []>} : vector<128x32xbf16>, vector<32x32xbf16>, vector<128x32xf32> -> vector<128x32xf32>
    %c0_9 = arith.constant 0 : index
    %c0_10 = arith.constant 0 : index
    %12 = vector.load %arg5[%c0_9, %c0_10] : memref<1x32xf32, #tpu.memory_space<vmem>>, vector<1x32xf32>
    %13 = vector.broadcast %12 : vector<1x32xf32> to vector<128x32xf32>
    %14 = arith.addf %11, %13 : vector<128x32xf32>
    %cst_11 = arith.constant 0.00999999977 : f32
    %15 = vector.broadcast %cst_11 : f32 to vector<128x32xf32>
    %16 = arith.mulf %15, %14 : vector<128x32xf32>
    %17 = arith.maximumf %14, %16 : vector<128x32xf32>
    %18 = arith.truncf %17 : vector<128x32xf32> to vector<128x32xbf16>
    %c0_12 = arith.constant 0 : index
    %c0_13 = arith.constant 0 : index
    %19 = vector.load %arg6[%c0_12, %c0_13] : memref<32x32xbf16, #tpu.memory_space<vmem>>, vector<32x32xbf16>
    %cst_14 = arith.constant dense<0.000000e+00> : vector<128x32xf32>
    %20 = tpu.matmul %18, %19, %cst_14 {dimension_numbers = #tpu.dot_dimension_numbers<[1], [0], [0], [1], [0, 0, 1, 1], [], []>} : vector<128x32xbf16>, vector<32x32xbf16>, vector<128x32xf32> -> vector<128x32xf32>
    %c0_15 = arith.constant 0 : index
    %c0_16 = arith.constant 0 : index
    %21 = vector.load %arg7[%c0_15, %c0_16] : memref<1x32xf32, #tpu.memory_space<vmem>>, vector<1x32xf32>
    %22 = vector.broadcast %21 : vector<1x32xf32> to vector<128x32xf32>
    %23 = arith.addf %20, %22 : vector<128x32xf32>
    %c0_17 = arith.constant 0 : index
    %c0_18 = arith.constant 0 : index
    %24 = vector.load %arg8[%c0_17, %c0_18] : memref<32x8xf32, #tpu.memory_space<vmem>>, vector<32x8xf32>
    %cst_19 = arith.constant dense<0.000000e+00> : vector<128x8xf32>
    %25 = tpu.matmul %23, %24, %cst_19 {dimension_numbers = #tpu.dot_dimension_numbers<[1], [0], [0], [1], [0, 0, 1, 1], [], []>} : vector<128x32xf32>, vector<32x8xf32>, vector<128x8xf32> -> vector<128x8xf32>
    %c0_20 = arith.constant 0 : index
    %c0_21 = arith.constant 0 : index
    %26 = vector.load %arg10[%c0_20, %c0_21] : memref<128x8xf32, #tpu.memory_space<vmem>>, vector<128x8xf32>
    tpu.vector_store %arg10[%c0_20, %c0_21], %25 {strides = array<i32>} : memref<128x8xf32, #tpu.memory_space<vmem>>, vector<128x8xf32>,
    %27 = arith.truncf %23 : vector<128x32xf32> to vector<128x32xbf16>
    %c0_22 = arith.constant 0 : index
    %c0_23 = arith.constant 0 : index
    %28 = vector.load %arg9[%c0_22, %c0_23] : memref<128x32xbf16, #tpu.memory_space<vmem>>, vector<128x32xbf16>
    tpu.vector_store %arg9[%c0_22, %c0_23], %27 {strides = array<i32>} : memref<128x32xbf16, #tpu.memory_space<vmem>>, vector<128x32xbf16>,
    return
  }
  func.func @transform_0(%arg0: i32) -> (i32, i32) {
    %c0_i32 = arith.constant 0 : i32
    %c0_i32_0 = arith.constant 0 : i32
    return %arg0, %c0_i32 : i32, i32
  }
  func.func @transform_1(%arg0: i32) -> (i32, i32) {
    %c0_i32 = arith.constant 0 : i32
    %c0_i32_0 = arith.constant 0 : i32
    %c0_i32_1 = arith.constant 0 : i32
    return %c0_i32, %c0_i32_0 : i32, i32
  }
  func.func @transform_2(%arg0: i32) -> (i32, i32) {
    %c0_i32 = arith.constant 0 : i32
    %c0_i32_0 = arith.constant 0 : i32
    %c0_i32_1 = arith.constant 0 : i32
    return %c0_i32, %c0_i32_0 : i32, i32
  }
  func.func @transform_3(%arg0: i32) -> (i32, i32) {
    %c0_i32 = arith.constant 0 : i32
    %c0_i32_0 = arith.constant 0 : i32
    %c0_i32_1 = arith.constant 0 : i32
    return %c0_i32, %c0_i32_0 : i32, i32
  }
  func.func @transform_4(%arg0: i32) -> (i32, i32) {
    %c0_i32 = arith.constant 0 : i32
    %c0_i32_0 = arith.constant 0 : i32
    %c0_i32_1 = arith.constant 0 : i32
    return %c0_i32, %c0_i32_0 : i32, i32
  }
  func.func @transform_5(%arg0: i32) -> (i32, i32) {
    %c0_i32 = arith.constant 0 : i32
    %c0_i32_0 = arith.constant 0 : i32
    %c0_i32_1 = arith.constant 0 : i32
    return %c0_i32, %c0_i32_0 : i32, i32
  }
  func.func @transform_6(%arg0: i32) -> (i32, i32) {
    %c0_i32 = arith.constant 0 : i32
    %c0_i32_0 = arith.constant 0 : i32
    %c0_i32_1 = arith.constant 0 : i32
    return %c0_i32, %c0_i32_0 : i32, i32
  }
  func.func @transform_7(%arg0: i32) -> (i32, i32) {
    %c0_i32 = arith.constant 0 : i32
    %c0_i32_0 = arith.constant 0 : i32
    %c0_i32_1 = arith.constant 0 : i32
    return %c0_i32, %c0_i32_0 : i32, i32
  }
  func.func @transform_8(%arg0: i32) -> (i32, i32) {
    %c0_i32 = arith.constant 0 : i32
    %c0_i32_0 = arith.constant 0 : i32
    return %arg0, %c0_i32 : i32, i32
  }
  func.func @transform_9(%arg0: i32) -> (i32, i32) {
    %c0_i32 = arith.constant 0 : i32
    %c0_i32_0 = arith.constant 0 : i32
    return %arg0, %c0_i32 : i32, i32
  }
}

</mosaic_0001>

<llo_original>
// kernel: tpu_custom_call.1
$region0: #{tpu_custom_call.1}
  #allocation0 [shape = 'u32[]', space=smem, size = 0x4, offset = 0x4, fixed_abs, tag = 'smem constant byte address 0x4 - core index']
  #allocation1 [shape = 'u32[144,128]{1,0:T(1,128)}', space=vmem, size = 0x12000, scoped, tag = 'internal scratch']
  %s0 = inlined_call_operand.vmem [shape: bf16[128,16], index: 0, kind: input, shape index: {}]
  %s1 = inlined_call_operand.vmem [shape: bf16[16,32], index: 1, kind: input, shape index: {}]
  %s2 = inlined_call_operand.vmem [shape: f32[1,32], index: 2, kind: input, shape index: {}]
  %s3 = inlined_call_operand.vmem [shape: bf16[32,32], index: 3, kind: input, shape index: {}]
  %s4 = inlined_call_operand.vmem [shape: f32[1,32], index: 4, kind: input, shape index: {}]
  %s5 = inlined_call_operand.vmem [shape: bf16[32,32], index: 5, kind: input, shape index: {}]
  %s6 = inlined_call_operand.vmem [shape: f32[1,32], index: 6, kind: input, shape index: {}]
  %s7 = inlined_call_operand.vmem [shape: f32[32,8], index: 7, kind: input, shape index: {}]
  %s8 = inlined_call_operand.vmem [shape: bf16[128,32], index: 8, kind: output, shape index: {0}]
  %s9 = inlined_call_operand.vmem [shape: f32[128,8], index: 9, kind: output, shape index: {1}]
  %10 = xla_tuple %s8, %s9
  %s11 = sld [smem:[#allocation0]]
  $region50: #{tpu_custom_call.1} parent=0
    _
  %s13 = ssub.s32 1, %s11
  %s14 = scalar_select 0, %s13, %s11
  // Predicated region
  $region2: #{tpu_custom_call.1} parent=0 // pred_check
    _
  $region3: #{tpu_custom_call.1} parent=0 // pred_check_branch
    %16 = sbr.rel (0) target = $region5
  $region4: #{tpu_custom_call.1} parent=0 // pred_region
    _
  $region5: #{tpu_custom_call.1} parent=0 // pred_fallthru
    _
  // Predicated region
  $region6: #{tpu_custom_call.1} parent=0 // pred_check
    _
  $region7: #{tpu_custom_call.1} parent=0 // pred_check_branch
    %18 = sbr.rel (0) target = $region9
  $region8: #{tpu_custom_call.1} parent=0 // pred_region
    _
  $region9: #{tpu_custom_call.1} parent=0 // pred_fallthru
    _
  // Predicated region
  $region10: #{tpu_custom_call.1} parent=0 // pred_check
    _
  $region11: #{tpu_custom_call.1} parent=0 // pred_check_branch
    %20 = sbr.rel (0) target = $region13
  $region12: #{tpu_custom_call.1} parent=0 // pred_region
    _
  $region13: #{tpu_custom_call.1} parent=0 // pred_fallthru
    _
  // Predicated region
  $region14: #{tpu_custom_call.1} parent=0 // pred_check
    _
  $region15: #{tpu_custom_call.1} parent=0 // pred_check_branch
    %22 = sbr.rel (0) target = $region17
  $region16: #{tpu_custom_call.1} parent=0 // pred_region
    _
  $region17: #{tpu_custom_call.1} parent=0 // pred_fallthru
    _
  // Predicated region
  $region18: #{tpu_custom_call.1} parent=0 // pred_check
    _
  $region19: #{tpu_custom_call.1} parent=0 // pred_check_branch
    %24 = sbr.rel (0) target = $region21
  $region20: #{tpu_custom_call.1} parent=0 // pred_region
    _
  $region21: #{tpu_custom_call.1} parent=0 // pred_fallthru
    _
  // Predicated region
  $region22: #{tpu_custom_call.1} parent=0 // pred_check
    _
  $region23: #{tpu_custom_call.1} parent=0 // pred_check_branch
    %26 = sbr.rel (0) target = $region25
  $region24: #{tpu_custom_call.1} parent=0 // pred_region
    _
  $region25: #{tpu_custom_call.1} parent=0 // pred_fallthru
    _
  // Predicated region
  $region26: #{tpu_custom_call.1} parent=0 // pred_check
    _
  $region27: #{tpu_custom_call.1} parent=0 // pred_check_branch
    %28 = sbr.rel (0) target = $region29
  $region28: #{tpu_custom_call.1} parent=0 // pred_region
    _
  $region29: #{tpu_custom_call.1} parent=0 // pred_fallthru
    _
  // Predicated region
  $region30: #{tpu_custom_call.1} parent=0 // pred_check
    _
  $region31: #{tpu_custom_call.1} parent=0 // pred_check_branch
    %30 = sbr.rel (0) target = $region33
  $region32: #{tpu_custom_call.1} parent=0 // pred_region
    _
  $region33: #{tpu_custom_call.1} parent=0 // pred_fallthru
    _
  %v32 = vld [vmem:[%s0] sm:$0xf]
  %v33 = vld [vmem:[%s0 + $0x4] sm:$0xf]
  %v34 = vld [vmem:[%s0 + $0x8] sm:$0xf]
  %v35 = vld [vmem:[%s0 + $0xc] sm:$0xf]
  %v36 = vld [vmem:[%s0 + $0x10] sm:$0xf]
  %v37 = vld [vmem:[%s0 + $0x14] sm:$0xf]
  %v38 = vld [vmem:[%s0 + $0x18] sm:$0xf]
  %v39 = vld [vmem:[%s0 + $0x1c] sm:$0xf]
  %v40 = vld [vmem:[%s0 + $0x20] sm:$0xf]
  %v41 = vld [vmem:[%s0 + $0x24] sm:$0xf]
  %v42 = vld [vmem:[%s0 + $0x28] sm:$0xf]
  %v43 = vld [vmem:[%s0 + $0x2c] sm:$0xf]
  %v44 = vld [vmem:[%s0 + $0x30] sm:$0xf]
  %v45 = vld [vmem:[%s0 + $0x34] sm:$0xf]
  %v46 = vld [vmem:[%s0 + $0x38] sm:$0xf]
  %v47 = vld [vmem:[%s0 + $0x3c] sm:$0xf]
  %v48 = vld [vmem:[%s1] sm:$0xf]
  %v49 = vld [vmem:[%s1 + $0x4] sm:$0xf]
  %v50 = vld [vmem:[%s2] sm:$0x1]
  %v52 = vlaneseq
  %v53 = vshrl.u32 %v52, 7
  %v54 = vsub.s32 0, %v53
  %v55 = vrot.slane %v50, %v54
  %v73 = vunpack.c.l.b16 %v32
  %v74 = vunpack.c.l.b16 %v33
  %v75 = vunpack.c.l.b16 %v34
  %v76 = vunpack.c.l.b16 %v35
  %v77 = vunpack.c.l.b16 %v36
  %v78 = vunpack.c.l.b16 %v37
  %v79 = vunpack.c.l.b16 %v38
  %v80 = vunpack.c.l.b16 %v39
  %v81 = vunpack.c.l.b16 %v40
  %v82 = vunpack.c.l.b16 %v41
  %v83 = vunpack.c.l.b16 %v42
  %v84 = vunpack.c.l.b16 %v43
  %v85 = vunpack.c.l.b16 %v44
  %v86 = vunpack.c.l.b16 %v45
  %v87 = vunpack.c.l.b16 %v46
  %v88 = vunpack.c.l.b16 %v47
  %v89 = vpack.c.b16 %v74, %v73
  %v90 = vpack.c.b16 %v76, %v75
  %v91 = vpack.c.b16 %v78, %v77
  %v92 = vpack.c.b16 %v80, %v79
  %v93 = vpack.c.b16 %v82, %v81
  %v94 = vpack.c.b16 %v84, %v83
  %v95 = vpack.c.b16 %v86, %v85
  %v96 = vpack.c.b16 %v88, %v87
  %v99 = vunpack.c.l.b16 %v48
  %v100 = vunpack.c.l.b16 %v49
  %v101 = vpack.c.b16 %v100, %v99
  %vm103 = vcmask 130048
  %v105 = vsel %vm103, %v89, 0
  %v108 = vsel %vm103, %v90, 0
  %v111 = vsel %vm103, %v91, 0
  %v114 = vsel %vm103, %v92, 0
  %v117 = vsel %vm103, %v93, 0
  %v120 = vsel %vm103, %v94, 0
  %v123 = vsel %vm103, %v95, 0
  %v126 = vsel %vm103, %v96, 0
  %128 = vmatprep.subr.bf16.mxu0 0
  %129 = vmatpush1.bf16.msra.mxu0 %v101
  %130 = vmatprep.subr.bf16.mxu0 0
  %131 = vmatpush1.bf16.msra.mxu0 0
  %132 = vmatprep.subr.bf16.mxu0 0
  %133 = vmatpush1.bf16.msra.mxu0 0
  %134 = vmatprep.subr.bf16.mxu0 0
  %135 = vmatpush1.bf16.msra.mxu0 0
  %136 = vmatprep.subr.bf16.mxu0 0
  %137 = vmatpush1.bf16.msra.mxu0 0
  %138 = vmatprep.subr.bf16.mxu0 0
  %139 = vmatpush1.bf16.msra.mxu0 0
  %140 = vmatprep.subr.bf16.mxu0 0
  %141 = vmatpush1.bf16.msra.mxu0 0
  %142 = vmatprep.subr.bf16.mxu0 0
  %143 = vmatpush1.bf16.msra.mxu0 0
  %144 = vmatprep.subr.bf16.mxu0 0
  %145 = vmatpush1.bf16.msra.mxu0 0
  %146 = vmatprep.subr.bf16.mxu0 0
  %147 = vmatpush1.bf16.msra.mxu0 0
  %148 = vmatprep.subr.bf16.mxu0 0
  %149 = vmatpush1.bf16.msra.mxu0 0
  %150 = vmatprep.subr.bf16.mxu0 0
  %151 = vmatpush1.bf16.msra.mxu0 0
  %152 = vmatprep.subr.bf16.mxu0 0
  %153 = vmatpush1.bf16.msra.mxu0 0
  %154 = vmatprep.subr.bf16.mxu0 0
  %155 = vmatpush1.bf16.msra.mxu0 0
  %156 = vmatprep.subr.bf16.mxu0 0
  %157 = vmatpush1.bf16.msra.mxu0 0
  %158 = vmatprep.subr.bf16.mxu0 0
  %159 = vmatpush1.bf16.msra.mxu0 0
  %160 = vmatprep.mubr.bf16.mxu0 0
  %161 = vmatmul.mubr.bf16.gmra.mrb[0].mxu0 %v105
  %v162 = vpop.f32.mrb[0].mxu0
  %v163 = vadd.f32 %v55, %v162
  %v164 = vpop.f32.mrb[0].mxu0
  %v165 = vpop.f32.mrb[0].mxu0
  %v166 = vadd.f32 %v55, %v165
  %v167 = vpop.f32.mrb[0].mxu0
  %168 = vmatprep.mubr.bf16.mxu0 0
  %169 = vmatmul.mubr.bf16.gmra.mrb[0].mxu0 %v108
  %v170 = vpop.f32.mrb[0].mxu0
  %v171 = vadd.f32 %v55, %v170
  %v172 = vpop.f32.mrb[0].mxu0
  %v173 = vpop.f32.mrb[0].mxu0
  %v174 = vadd.f32 %v55, %v173
  %v175 = vpop.f32.mrb[0].mxu0
  %176 = vmatprep.mubr.bf16.mxu0 0
  %177 = vmatmul.mubr.bf16.gmra.mrb[0].mxu0 %v111
  %v178 = vpop.f32.mrb[0].mxu0
  %v179 = vadd.f32 %v55, %v178
  %v180 = vpop.f32.mrb[0].mxu0
  %v181 = vpop.f32.mrb[0].mxu0
  %v182 = vadd.f32 %v55, %v181
  %v183 = vpop.f32.mrb[0].mxu0
  %184 = vmatprep.mubr.bf16.mxu0 0
  %185 = vmatmul.mubr.bf16.gmra.mrb[0].mxu0 %v114
  %v186 = vpop.f32.mrb[0].mxu0
  %v187 = vadd.f32 %v55, %v186
  %v188 = vpop.f32.mrb[0].mxu0
  %v189 = vpop.f32.mrb[0].mxu0
  %v190 = vadd.f32 %v55, %v189
  %v191 = vpop.f32.mrb[0].mxu0
  %192 = vmatprep.mubr.bf16.mxu0 0
  %193 = vmatmul.mubr.bf16.gmra.mrb[0].mxu0 %v117
  %v194 = vpop.f32.mrb[0].mxu0
  %v195 = vadd.f32 %v55, %v194
  %v196 = vpop.f32.mrb[0].mxu0
  %v197 = vpop.f32.mrb[0].mxu0
  %v198 = vadd.f32 %v55, %v197
  %v199 = vpop.f32.mrb[0].mxu0
  %200 = vmatprep.mubr.bf16.mxu0 0
  %201 = vmatmul.mubr.bf16.gmra.mrb[0].mxu0 %v120
  %v202 = vpop.f32.mrb[0].mxu0
  %v203 = vadd.f32 %v55, %v202
  %v204 = vpop.f32.mrb[0].mxu0
  %v205 = vpop.f32.mrb[0].mxu0
  %v206 = vadd.f32 %v55, %v205
  %v207 = vpop.f32.mrb[0].mxu0
  %208 = vmatprep.mubr.bf16.mxu0 0
  %209 = vmatmul.mubr.bf16.gmra.mrb[0].mxu0 %v123
  %v210 = vpop.f32.mrb[0].mxu0
  %v211 = vadd.f32 %v55, %v210
  %v212 = vpop.f32.mrb[0].mxu0
  %v213 = vpop.f32.mrb[0].mxu0
  %v214 = vadd.f32 %v55, %v213
  %v215 = vpop.f32.mrb[0].mxu0
  %216 = vmatprep.mubr.bf16.mxu0 0
  %217 = vmatmul.mubr.bf16.gmra.mrb[0].mxu0 %v126
  %v218 = vpop.f32.mrb[0].mxu0
  %v219 = vadd.f32 %v55, %v218
  %v220 = vpop.f32.mrb[0].mxu0
  %v221 = vpop.f32.mrb[0].mxu0
  %v222 = vadd.f32 %v55, %v221
  %v223 = vpop.f32.mrb[0].mxu0
  %224 = vdwg.mxu0
  %v225 = vmul.f32 %v163, 0.01
  %v226 = vmul.f32 %v166, 0.01
  %v227 = vmul.f32 %v171, 0.01
  %v228 = vmul.f32 %v174, 0.01
  %v229 = vmul.f32 %v179, 0.01
  %v230 = vmul.f32 %v182, 0.01
  %v231 = vmul.f32 %v187, 0.01
  %v232 = vmul.f32 %v190, 0.01
  %v233 = vmul.f32 %v195, 0.01
  %v234 = vmul.f32 %v198, 0.01
  %v235 = vmul.f32 %v203, 0.01
  %v236 = vmul.f32 %v206, 0.01
  %v237 = vmul.f32 %v211, 0.01
  %v238 = vmul.f32 %v214, 0.01
  %v239 = vmul.f32 %v219, 0.01
  %v240 = vmul.f32 %v222, 0.01
  %v241 = vmax.f32 %v163, %v225
  %v242 = vmax.f32 %v166, %v226
  %v243 = vmax.f32 %v171, %v227
  %v244 = vmax.f32 %v174, %v228
  %v245 = vmax.f32 %v179, %v229
  %v246 = vmax.f32 %v182, %v230
  %v247 = vmax.f32 %v187, %v231
  %v248 = vmax.f32 %v190, %v232
  %v249 = vmax.f32 %v195, %v233
  %v250 = vmax.f32 %v198, %v234
  %v251 = vmax.f32 %v203, %v235
  %v252 = vmax.f32 %v206, %v236
  %v253 = vmax.f32 %v211, %v237
  %v254 = vmax.f32 %v214, %v238
  %v255 = vmax.f32 %v219, %v239
  %v256 = vmax.f32 %v222, %v240
  %v257 = vpack.c.bf16 %v242, %v241
  %v258 = vpack.c.bf16 %v244, %v243
  %v259 = vpack.c.bf16 %v246, %v245
  %v260 = vpack.c.bf16 %v248, %v247
  %v261 = vpack.c.bf16 %v250, %v249
  %v262 = vpack.c.bf16 %v252, %v251
  %v263 = vpack.c.bf16 %v254, %v253
  %v264 = vpack.c.bf16 %v256, %v255
  %v265 = vld [vmem:[%s3] sm:$0xf]
  %v266 = vld [vmem:[%s3 + $0x4] sm:$0xf]
  %v267 = vld [vmem:[%s3 + $0x8] sm:$0xf]
  %v268 = vld [vmem:[%s3 + $0xc] sm:$0xf]
  %v269 = vld [vmem:[%s4] sm:$0x1]
  %v271 = vlaneseq
  %v272 = vshrl.u32 %v271, 7
  %v273 = vsub.s32 0, %v272
  %v274 = vrot.slane %v269, %v273
  %v280 = vunpack.c.l.b16 %v265
  %v281 = vunpack.c.l.b16 %v266
  %v282 = vunpack.c.l.b16 %v267
  %v283 = vunpack.c.l.b16 %v268
  %v284 = vpack.c.b16 %v281, %v280
  %v285 = vpack.c.b16 %v283, %v282
  %vm288 = vcmask 261120
  %v290 = vsel %vm288, %v257, 0
  %v293 = vsel %vm288, %v258, 0
  %v296 = vsel %vm288, %v259, 0
  %v299 = vsel %vm288, %v260, 0
  %v302 = vsel %vm288, %v261, 0
  %v305 = vsel %vm288, %v262, 0
  %v308 = vsel %vm288, %v263, 0
  %v311 = vsel %vm288, %v264, 0
  %313 = vmatprep.subr.bf16.mxu0 0
  %314 = vmatpush1.bf16.msra.mxu0 %v284
  %315 = vmatprep.subr.bf16.mxu0 0
  %316 = vmatpush1.bf16.msra.mxu0 %v285
  %317 = vmatprep.subr.bf16.mxu0 0
  %318 = vmatpush1.bf16.msra.mxu0 0
  %319 = vmatprep.subr.bf16.mxu0 0
  %320 = vmatpush1.bf16.msra.mxu0 0
  %321 = vmatprep.subr.bf16.mxu0 0
  %322 = vmatpush1.bf16.msra.mxu0 0
  %323 = vmatprep.subr.bf16.mxu0 0
  %324 = vmatpush1.bf16.msra.mxu0 0
  %325 = vmatprep.subr.bf16.mxu0 0
  %326 = vmatpush1.bf16.msra.mxu0 0
  %327 = vmatprep.subr.bf16.mxu0 0
  %328 = vmatpush1.bf16.msra.mxu0 0
  %329 = vmatprep.subr.bf16.mxu0 0
  %330 = vmatpush1.bf16.msra.mxu0 0
  %331 = vmatprep.subr.bf16.mxu0 0
  %332 = vmatpush1.bf16.msra.mxu0 0
  %333 = vmatprep.subr.bf16.mxu0 0
  %334 = vmatpush1.bf16.msra.mxu0 0
  %335 = vmatprep.subr.bf16.mxu0 0
  %336 = vmatpush1.bf16.msra.mxu0 0
  %337 = vmatprep.subr.bf16.mxu0 0
  %338 = vmatpush1.bf16.msra.mxu0 0
  %339 = vmatprep.subr.bf16.mxu0 0
  %340 = vmatpush1.bf16.msra.mxu0 0
  %341 = vmatprep.subr.bf16.mxu0 0
  %342 = vmatpush1.bf16.msra.mxu0 0
  %343 = vmatprep.subr.bf16.mxu0 0
  %344 = vmatpush1.bf16.msra.mxu0 0
  %345 = vmatprep.mubr.bf16.mxu0 0
  %346 = vmatmul.mubr.bf16.gmra.mrb[0].mxu0 %v290
  %v347 = vpop.f32.mrb[0].mxu0
  %v348 = vadd.f32 %v274, %v347
  %v349 = vpop.f32.mrb[0].mxu0
  %v350 = vpop.f32.mrb[0].mxu0
  %v351 = vadd.f32 %v274, %v350
  %v352 = vpop.f32.mrb[0].mxu0
  %353 = vmatprep.mubr.bf16.mxu0 0
  %354 = vmatmul.mubr.bf16.gmra.mrb[0].mxu0 %v293
  %v355 = vpop.f32.mrb[0].mxu0
  %v356 = vadd.f32 %v274, %v355
  %v357 = vpop.f32.mrb[0].mxu0
  %v358 = vpop.f32.mrb[0].mxu0
  %v359 = vadd.f32 %v274, %v358
  %v360 = vpop.f32.mrb[0].mxu0
  %361 = vmatprep.mubr.bf16.mxu0 0
  %362 = vmatmul.mubr.bf16.gmra.mrb[0].mxu0 %v296
  %v363 = vpop.f32.mrb[0].mxu0
  %v364 = vadd.f32 %v274, %v363
  %v365 = vpop.f32.mrb[0].mxu0
  %v366 = vpop.f32.mrb[0].mxu0
  %v367 = vadd.f32 %v274, %v366
  %v368 = vpop.f32.mrb[0].mxu0
  %369 = vmatprep.mubr.bf16.mxu0 0
  %370 = vmatmul.mubr.bf16.gmra.mrb[0].mxu0 %v299
  %v371 = vpop.f32.mrb[0].mxu0
  %v372 = vadd.f32 %v274, %v371
  %v373 = vpop.f32.mrb[0].mxu0
  %v374 = vpop.f32.mrb[0].mxu0
  %v375 = vadd.f32 %v274, %v374
  %v376 = vpop.f32.mrb[0].mxu0
  %377 = vmatprep.mubr.bf16.mxu0 0
  %378 = vmatmul.mubr.bf16.gmra.mrb[0].mxu0 %v302
  %v379 = vpop.f32.mrb[0].mxu0
  %v380 = vadd.f32 %v274, %v379
  %v381 = vpop.f32.mrb[0].mxu0
  %v382 = vpop.f32.mrb[0].mxu0
  %v383 = vadd.f32 %v274, %v382
  %v384 = vpop.f32.mrb[0].mxu0
  %385 = vmatprep.mubr.bf16.mxu0 0
  %386 = vmatmul.mubr.bf16.gmra.mrb[0].mxu0 %v305
  %v387 = vpop.f32.mrb[0].mxu0
  %v388 = vadd.f32 %v274, %v387
  %v389 = vpop.f32.mrb[0].mxu0
  %v390 = vpop.f32.mrb[0].mxu0
  %v391 = vadd.f32 %v274, %v390
  %v392 = vpop.f32.mrb[0].mxu0
  %393 = vmatprep.mubr.bf16.mxu0 0
  %394 = vmatmul.mubr.bf16.gmra.mrb[0].mxu0 %v308
  %v395 = vpop.f32.mrb[0].mxu0
  %v396 = vadd.f32 %v274, %v395
  %v397 = vpop.f32.mrb[0].mxu0
  %v398 = vpop.f32.mrb[0].mxu0
  %v399 = vadd.f32 %v274, %v398
  %v400 = vpop.f32.mrb[0].mxu0
  %401 = vmatprep.mubr.bf16.mxu0 0
  %402 = vmatmul.mubr.bf16.gmra.mrb[0].mxu0 %v311
  %v403 = vpop.f32.mrb[0].mxu0
  %v404 = vadd.f32 %v274, %v403
  %v405 = vpop.f32.mrb[0].mxu0
  %v406 = vpop.f32.mrb[0].mxu0
  %v407 = vadd.f32 %v274, %v406
  %v408 = vpop.f32.mrb[0].mxu0
  %409 = vdwg.mxu0
  %v410 = vmul.f32 %v348, 0.01
  %v411 = vmul.f32 %v351, 0.01
  %v412 = vmul.f32 %v356, 0.01
  %v413 = vmul.f32 %v359, 0.01
  %v414 = vmul.f32 %v364, 0.01
  %v415 = vmul.f32 %v367, 0.01
  %v416 = vmul.f32 %v372, 0.01
  %v417 = vmul.f32 %v375, 0.01
  %v418 = vmul.f32 %v380, 0.01
  %v419 = vmul.f32 %v383, 0.01
  %v420 = vmul.f32 %v388, 0.01
  %v421 = vmul.f32 %v391, 0.01
  %v422 = vmul.f32 %v396, 0.01
  %v423 = vmul.f32 %v399, 0.01
  %v424 = vmul.f32 %v404, 0.01
  %v425 = vmul.f32 %v407, 0.01
  %v426 = vmax.f32 %v348, %v410
  %v427 = vmax.f32 %v351, %v411
  %v428 = vmax.f32 %v356, %v412
  %v429 = vmax.f32 %v359, %v413
  %v430 = vmax.f32 %v364, %v414
  %v431 = vmax.f32 %v367, %v415
  %v432 = vmax.f32 %v372, %v416
  %v433 = vmax.f32 %v375, %v417
  %v434 = vmax.f32 %v380, %v418
  %v435 = vmax.f32 %v383, %v419
  %v436 = vmax.f32 %v388, %v420
  %v437 = vmax.f32 %v391, %v421
  %v438 = vmax.f32 %v396, %v422
  %v439 = vmax.f32 %v399, %v423
  %v440 = vmax.f32 %v404, %v424
  %v441 = vmax.f32 %v407, %v425
  %v442 = vpack.c.bf16 %v427, %v426
  %v443 = vpack.c.bf16 %v429, %v428
  %v444 = vpack.c.bf16 %v431, %v430
  %v445 = vpack.c.bf16 %v433, %v432
  %v446 = vpack.c.bf16 %v435, %v434
  %v447 = vpack.c.bf16 %v437, %v436
  %v448 = vpack.c.bf16 %v439, %v438
  %v449 = vpack.c.bf16 %v441, %v440
  %v450 = vld [vmem:[%s5] sm:$0xf]
  %v451 = vld [vmem:[%s5 + $0x4] sm:$0xf]
  %v452 = vld [vmem:[%s5 + $0x8] sm:$0xf]
  %v453 = vld [vmem:[%s5 + $0xc] sm:$0xf]
  %v454 = vld [vmem:[%s6] sm:$0x1]
  %v456 = vlaneseq
  %v457 = vshrl.u32 %v456, 7
  %v458 = vsub.s32 0, %v457
  %v459 = vrot.slane %v454, %v458
  %v465 = vunpack.c.l.b16 %v450
  %v466 = vunpack.c.l.b16 %v451
  %v467 = vunpack.c.l.b16 %v452
  %v468 = vunpack.c.l.b16 %v453
  %v469 = vpack.c.b16 %v466, %v465
  %v470 = vpack.c.b16 %v468, %v467
  %v474 = vsel %vm288, %v442, 0
  %v477 = vsel %vm288, %v443, 0
  %v480 = vsel %vm288, %v444, 0
  %v483 = vsel %vm288, %v445, 0
  %v486 = vsel %vm288, %v446, 0
  %v489 = vsel %vm288, %v447, 0
  %v492 = vsel %vm288, %v448, 0
  %v495 = vsel %vm288, %v449, 0
  %497 = vmatprep.subr.bf16.mxu0 0
  %498 = vmatpush1.bf16.msra.mxu0 %v469
  %499 = vmatprep.subr.bf16.mxu0 0
  %500 = vmatpush1.bf16.msra.mxu0 %v470
  %501 = vmatprep.subr.bf16.mxu0 0
  %502 = vmatpush1.bf16.msra.mxu0 0
  %503 = vmatprep.subr.bf16.mxu0 0
  %504 = vmatpush1.bf16.msra.mxu0 0
  %505 = vmatprep.subr.bf16.mxu0 0
  %506 = vmatpush1.bf16.msra.mxu0 0
  %507 = vmatprep.subr.bf16.mxu0 0
  %508 = vmatpush1.bf16.msra.mxu0 0
  %509 = vmatprep.subr.bf16.mxu0 0
  %510 = vmatpush1.bf16.msra.mxu0 0
  %511 = vmatprep.subr.bf16.mxu0 0
  %512 = vmatpush1.bf16.msra.mxu0 0
  %513 = vmatprep.subr.bf16.mxu0 0
  %514 = vmatpush1.bf16.msra.mxu0 0
  %515 = vmatprep.subr.bf16.mxu0 0
  %516 = vmatpush1.bf16.msra.mxu0 0
  %517 = vmatprep.subr.bf16.mxu0 0
  %518 = vmatpush1.bf16.msra.mxu0 0
  %519 = vmatprep.subr.bf16.mxu0 0
  %520 = vmatpush1.bf16.msra.mxu0 0
  %521 = vmatprep.subr.bf16.mxu0 0
  %522 = vmatpush1.bf16.msra.mxu0 0
  %523 = vmatprep.subr.bf16.mxu0 0
  %524 = vmatpush1.bf16.msra.mxu0 0
  %525 = vmatprep.subr.bf16.mxu0 0
  %526 = vmatpush1.bf16.msra.mxu0 0
  %527 = vmatprep.subr.bf16.mxu0 0
  %528 = vmatpush1.bf16.msra.mxu0 0
  %529 = vmatprep.mubr.bf16.mxu0 0
  %530 = vmatmul.mubr.bf16.gmra.mrb[0].mxu0 %v474
  %v531 = vpop.f32.mrb[0].mxu0
  %v532 = vadd.f32 %v459, %v531
  %v533 = vpop.f32.mrb[0].mxu0
  %v534 = vpop.f32.mrb[0].mxu0
  %v535 = vadd.f32 %v459, %v534
  %v536 = vpop.f32.mrb[0].mxu0
  %537 = vmatprep.mubr.bf16.mxu0 0
  %538 = vmatmul.mubr.bf16.gmra.mrb[0].mxu0 %v477
  %v539 = vpop.f32.mrb[0].mxu0
  %v540 = vadd.f32 %v459, %v539
  %v541 = vpop.f32.mrb[0].mxu0
  %v542 = vpop.f32.mrb[0].mxu0
  %v543 = vadd.f32 %v459, %v542
  %v544 = vpop.f32.mrb[0].mxu0
  %545 = vmatprep.mubr.bf16.mxu0 0
  %546 = vmatmul.mubr.bf16.gmra.mrb[0].mxu0 %v480
  %v547 = vpop.f32.mrb[0].mxu0
  %v548 = vadd.f32 %v459, %v547
  %v549 = vpop.f32.mrb[0].mxu0
  %v550 = vpop.f32.mrb[0].mxu0
  %v551 = vadd.f32 %v459, %v550
  %v552 = vpop.f32.mrb[0].mxu0
  %553 = vmatprep.mubr.bf16.mxu0 0
  %554 = vmatmul.mubr.bf16.gmra.mrb[0].mxu0 %v483
  %v555 = vpop.f32.mrb[0].mxu0
  %v556 = vadd.f32 %v459, %v555
  %v557 = vpop.f32.mrb[0].mxu0
  %v558 = vpop.f32.mrb[0].mxu0
  %v559 = vadd.f32 %v459, %v558
  %v560 = vpop.f32.mrb[0].mxu0
  %561 = vmatprep.mubr.bf16.mxu0 0
  %562 = vmatmul.mubr.bf16.gmra.mrb[0].mxu0 %v486
  %v563 = vpop.f32.mrb[0].mxu0
  %v564 = vadd.f32 %v459, %v563
  %v565 = vpop.f32.mrb[0].mxu0
  %v566 = vpop.f32.mrb[0].mxu0
  %v567 = vadd.f32 %v459, %v566
  %v568 = vpop.f32.mrb[0].mxu0
  %569 = vmatprep.mubr.bf16.mxu0 0
  %570 = vmatmul.mubr.bf16.gmra.mrb[0].mxu0 %v489
  %v571 = vpop.f32.mrb[0].mxu0
  %v572 = vadd.f32 %v459, %v571
  %v573 = vpop.f32.mrb[0].mxu0
  %v574 = vpop.f32.mrb[0].mxu0
  %v575 = vadd.f32 %v459, %v574
  %v576 = vpop.f32.mrb[0].mxu0
  %577 = vmatprep.mubr.bf16.mxu0 0
  %578 = vmatmul.mubr.bf16.gmra.mrb[0].mxu0 %v492
  %v579 = vpop.f32.mrb[0].mxu0
  %v580 = vadd.f32 %v459, %v579
  %v581 = vpop.f32.mrb[0].mxu0
  %v582 = vpop.f32.mrb[0].mxu0
  %v583 = vadd.f32 %v459, %v582
  %v584 = vpop.f32.mrb[0].mxu0
  %585 = vmatprep.mubr.bf16.mxu0 0
  %586 = vmatmul.mubr.bf16.gmra.mrb[0].mxu0 %v495
  %v587 = vpop.f32.mrb[0].mxu0
  %v588 = vadd.f32 %v459, %v587
  %v589 = vpop.f32.mrb[0].mxu0
  %v590 = vpop.f32.mrb[0].mxu0
  %v591 = vadd.f32 %v459, %v590
  %v592 = vpop.f32.mrb[0].mxu0
  %593 = vdwg.mxu0
  %v594 = vld [vmem:[%s7] sm:$0xff]
  %v595 = vld [vmem:[%s7 + $0x8] sm:$0xff]
  %v596 = vld [vmem:[%s7 + $0x10] sm:$0xff]
  %v597 = vld [vmem:[%s7 + $0x18] sm:$0xff]
  %v599 = vsel %vm288, %v532, 0
  %v602 = vsel %vm288, %v535, 0
  %v605 = vsel %vm288, %v540, 0
  %v608 = vsel %vm288, %v543, 0
  %v611 = vsel %vm288, %v548, 0
  %v614 = vsel %vm288, %v551, 0
  %v617 = vsel %vm288, %v556, 0
  %v620 = vsel %vm288, %v559, 0
  %v623 = vsel %vm288, %v564, 0
  %v626 = vsel %vm288, %v567, 0
  %v629 = vsel %vm288, %v572, 0
  %v632 = vsel %vm288, %v575, 0
  %v635 = vsel %vm288, %v580, 0
  %v638 = vsel %vm288, %v583, 0
  %v641 = vsel %vm288, %v588, 0
  %v644 = vsel %vm288, %v591, 0
  %646 = vmatprep.subr.mxu0 0.0
  %647 = vmatpush1.msra.mxu0 %v594
  %648 = vmatprep.subr.mxu0 0.0
  %649 = vmatpush1.msra.mxu0 %v595
  %650 = vmatprep.subr.mxu0 0.0
  %651 = vmatpush1.msra.mxu0 %v596
  %652 = vmatprep.subr.mxu0 0.0
  %653 = vmatpush1.msra.mxu0 %v597
  %654 = vmatprep.subr.mxu0 0.0
  %655 = vmatpush1.msra.mxu0 0.0
  %656 = vmatprep.subr.mxu0 0.0
  %657 = vmatpush1.msra.mxu0 0.0
  %658 = vmatprep.subr.mxu0 0.0
  %659 = vmatpush1.msra.mxu0 0.0
  %660 = vmatprep.subr.mxu0 0.0
  %661 = vmatpush1.msra.mxu0 0.0
  %662 = vmatprep.subr.mxu0 0.0
  %663 = vmatpush1.msra.mxu0 0.0
  %664 = vmatprep.subr.mxu0 0.0
  %665 = vmatpush1.msra.mxu0 0.0
  %666 = vmatprep.subr.mxu0 0.0
  %667 = vmatpush1.msra.mxu0 0.0
  %668 = vmatprep.subr.mxu0 0.0
  %669 = vmatpush1.msra.mxu0 0.0
  %670 = vmatprep.subr.mxu0 0.0
  %671 = vmatpush1.msra.mxu0 0.0
  %672 = vmatprep.subr.mxu0 0.0
  %673 = vmatpush1.msra.mxu0 0.0
  %674 = vmatprep.subr.mxu0 0.0
  %675 = vmatpush1.msra.mxu0 0.0
  %676 = vmatprep.subr.mxu0 0.0
  %677 = vmatpush1.msra.mxu0 0.0
  %678 = vmatprep.subr.mxu0 0.0
  %679 = vmatpush1.msra.mxu0 0.0
  %680 = vmatprep.subr.mxu0 0.0
  %681 = vmatpush1.msra.mxu0 0.0
  %682 = vmatprep.subr.mxu0 0.0
  %683 = vmatpush1.msra.mxu0 0.0
  %684 = vmatprep.subr.mxu0 0.0
  %685 = vmatpush1.msra.mxu0 0.0
  %686 = vmatprep.subr.mxu0 0.0
  %687 = vmatpush1.msra.mxu0 0.0
  %688 = vmatprep.subr.mxu0 0.0
  %689 = vmatpush1.msra.mxu0 0.0
  %690 = vmatprep.subr.mxu0 0.0
  %691 = vmatpush1.msra.mxu0 0.0
  %692 = vmatprep.subr.mxu0 0.0
  %693 = vmatpush1.msra.mxu0 0.0
  %694 = vmatprep.subr.mxu0 0.0
  %695 = vmatpush1.msra.mxu0 0.0
  %696 = vmatprep.subr.mxu0 0.0
  %697 = vmatpush1.msra.mxu0 0.0
  %698 = vmatprep.subr.mxu0 0.0
  %699 = vmatpush1.msra.mxu0 0.0
  %700 = vmatprep.subr.mxu0 0.0
  %701 = vmatpush1.msra.mxu0 0.0
  %702 = vmatprep.subr.mxu0 0.0
  %703 = vmatpush1.msra.mxu0 0.0
  %704 = vmatprep.subr.mxu0 0.0
  %705 = vmatpush1.msra.mxu0 0.0
  %706 = vmatprep.subr.mxu0 0.0
  %707 = vmatpush1.msra.mxu0 0.0
  %708 = vmatprep.subr.mxu0 0.0
  %709 = vmatpush1.msra.mxu0 0.0
  %710 = vmatprep.mubr.f32.mxu0 0.0
  %711 = vmatmul.mubr.f32.gmra.mrb[0].mxu0 %v599
  %v712 = vpop.f32.mrb[0].mxu0
  %v713 = vadd.f32 0.0, %v712
  %v714 = vpop.f32.mrb[0].mxu0
  %715 = vmatprep.mubr.f32.mxu0 0.0
  %716 = vmatmul.mubr.f32.gmra.mrb[0].mxu0 %v602
  %v717 = vpop.f32.mrb[0].mxu0
  %v718 = vadd.f32 0.0, %v717
  %v719 = vpop.f32.mrb[0].mxu0
  %720 = vmatprep.mubr.f32.mxu0 0.0
  %721 = vmatmul.mubr.f32.gmra.mrb[0].mxu0 %v605
  %v722 = vpop.f32.mrb[0].mxu0
  %v723 = vadd.f32 0.0, %v722
  %v724 = vpop.f32.mrb[0].mxu0
  %725 = vmatprep.mubr.f32.mxu0 0.0
  %726 = vmatmul.mubr.f32.gmra.mrb[0].mxu0 %v608
  %v727 = vpop.f32.mrb[0].mxu0
  %v728 = vadd.f32 0.0, %v727
  %v729 = vpop.f32.mrb[0].mxu0
  %730 = vmatprep.mubr.f32.mxu0 0.0
  %731 = vmatmul.mubr.f32.gmra.mrb[0].mxu0 %v611
  %v732 = vpop.f32.mrb[0].mxu0
  %v733 = vadd.f32 0.0, %v732
  %v734 = vpop.f32.mrb[0].mxu0
  %735 = vmatprep.mubr.f32.mxu0 0.0
  %736 = vmatmul.mubr.f32.gmra.mrb[0].mxu0 %v614
  %v737 = vpop.f32.mrb[0].mxu0
  %v738 = vadd.f32 0.0, %v737
  %v739 = vpop.f32.mrb[0].mxu0
  %740 = vmatprep.mubr.f32.mxu0 0.0
  %741 = vmatmul.mubr.f32.gmra.mrb[0].mxu0 %v617
  %v742 = vpop.f32.mrb[0].mxu0
  %v743 = vadd.f32 0.0, %v742
  %v744 = vpop.f32.mrb[0].mxu0
  %745 = vmatprep.mubr.f32.mxu0 0.0
  %746 = vmatmul.mubr.f32.gmra.mrb[0].mxu0 %v620
  %v747 = vpop.f32.mrb[0].mxu0
  %v748 = vadd.f32 0.0, %v747
  %v749 = vpop.f32.mrb[0].mxu0
  %750 = vmatprep.mubr.f32.mxu0 0.0
  %751 = vmatmul.mubr.f32.gmra.mrb[0].mxu0 %v623
  %v752 = vpop.f32.mrb[0].mxu0
  %v753 = vadd.f32 0.0, %v752
  %v754 = vpop.f32.mrb[0].mxu0
  %755 = vmatprep.mubr.f32.mxu0 0.0
  %756 = vmatmul.mubr.f32.gmra.mrb[0].mxu0 %v626
  %v757 = vpop.f32.mrb[0].mxu0
  %v758 = vadd.f32 0.0, %v757
  %v759 = vpop.f32.mrb[0].mxu0
  %760 = vmatprep.mubr.f32.mxu0 0.0
  %761 = vmatmul.mubr.f32.gmra.mrb[0].mxu0 %v629
  %v762 = vpop.f32.mrb[0].mxu0
  %v763 = vadd.f32 0.0, %v762
  %v764 = vpop.f32.mrb[0].mxu0
  %765 = vmatprep.mubr.f32.mxu0 0.0
  %766 = vmatmul.mubr.f32.gmra.mrb[0].mxu0 %v632
  %v767 = vpop.f32.mrb[0].mxu0
  %v768 = vadd.f32 0.0, %v767
  %v769 = vpop.f32.mrb[0].mxu0
  %770 = vmatprep.mubr.f32.mxu0 0.0
  %771 = vmatmul.mubr.f32.gmra.mrb[0].mxu0 %v635
  %v772 = vpop.f32.mrb[0].mxu0
  %v773 = vadd.f32 0.0, %v772
  %v774 = vpop.f32.mrb[0].mxu0
  %775 = vmatprep.mubr.f32.mxu0 0.0
  %776 = vmatmul.mubr.f32.gmra.mrb[0].mxu0 %v638
  %v777 = vpop.f32.mrb[0].mxu0
  %v778 = vadd.f32 0.0, %v777
  %v779 = vpop.f32.mrb[0].mxu0
  %780 = vmatprep.mubr.f32.mxu0 0.0
  %781 = vmatmul.mubr.f32.gmra.mrb[0].mxu0 %v641
  %v782 = vpop.f32.mrb[0].mxu0
  %v783 = vadd.f32 0.0, %v782
  %v784 = vpop.f32.mrb[0].mxu0
  %785 = vmatprep.mubr.f32.mxu0 0.0
  %786 = vmatmul.mubr.f32.gmra.mrb[0].mxu0 %v644
  %v787 = vpop.f32.mrb[0].mxu0
  %v788 = vadd.f32 0.0, %v787
  %v789 = vpop.f32.mrb[0].mxu0
  %790 = vdwg.mxu0
  %vm791 = vcmask 64512
  %792 = vst.msk [vmem:[%s9] sm:$0xff] %vm791, %v713
  %793 = vst.msk [vmem:[%s9 + $0x8] sm:$0xff] %vm791, %v718
  %794 = vst.msk [vmem:[%s9 + $0x10] sm:$0xff] %vm791, %v723
  %795 = vst.msk [vmem:[%s9 + $0x18] sm:$0xff] %vm791, %v728
  %796 = vst.msk [vmem:[%s9 + $0x20] sm:$0xff] %vm791, %v733
  %797 = vst.msk [vmem:[%s9 + $0x28] sm:$0xff] %vm791, %v738
  %798 = vst.msk [vmem:[%s9 + $0x30] sm:$0xff] %vm791, %v743
  %799 = vst.msk [vmem:[%s9 + $0x38] sm:$0xff] %vm791, %v748
  %800 = vst.msk [vmem:[%s9 + $0x40] sm:$0xff] %vm791, %v753
  %801 = vst.msk [vmem:[%s9 + $0x48] sm:$0xff] %vm791, %v758
  %802 = vst.msk [vmem:[%s9 + $0x50] sm:$0xff] %vm791, %v763
  %803 = vst.msk [vmem:[%s9 + $0x58] sm:$0xff] %vm791, %v768
  %804 = vst.msk [vmem:[%s9 + $0x60] sm:$0xff] %vm791, %v773
  %805 = vst.msk [vmem:[%s9 + $0x68] sm:$0xff] %vm791, %v778
  %806 = vst.msk [vmem:[%s9 + $0x70] sm:$0xff] %vm791, %v783
  %807 = vst.msk [vmem:[%s9 + $0x78] sm:$0xff] %vm791, %v788
  %v808 = vpack.c.bf16 %v535, %v532
  %v809 = vpack.c.bf16 %v543, %v540
  %v810 = vpack.c.bf16 %v551, %v548
  %v811 = vpack.c.bf16 %v559, %v556
  %v812 = vpack.c.bf16 %v567, %v564
  %v813 = vpack.c.bf16 %v575, %v572
  %v814 = vpack.c.bf16 %v583, %v580
  %v815 = vpack.c.bf16 %v591, %v588
  %v824 = vunpack.c.l.b16 %v808
  %v825 = vunpack.c.h.b16 %v808
  %v826 = vunpack.c.l.b16 %v809
  %v827 = vunpack.c.h.b16 %v809
  %v828 = vunpack.c.l.b16 %v810
  %v829 = vunpack.c.h.b16 %v810
  %v830 = vunpack.c.l.b16 %v811
  %v831 = vunpack.c.h.b16 %v811
  %v832 = vunpack.c.l.b16 %v812
  %v833 = vunpack.c.h.b16 %v812
  %v834 = vunpack.c.l.b16 %v813
  %v835 = vunpack.c.h.b16 %v813
  %v836 = vunpack.c.l.b16 %v814
  %v837 = vunpack.c.h.b16 %v814
  %v838 = vunpack.c.l.b16 %v815
  %v839 = vunpack.c.h.b16 %v815
  %v840 = vpack.c.b16 %v824, %v824
  %v841 = vpack.c.b16 %v825, %v825
  %v842 = vpack.c.b16 %v826, %v826
  %v843 = vpack.c.b16 %v827, %v827
  %v844 = vpack.c.b16 %v828, %v828
  %v845 = vpack.c.b16 %v829, %v829
  %v846 = vpack.c.b16 %v830, %v830
  %v847 = vpack.c.b16 %v831, %v831
  %v848 = vpack.c.b16 %v832, %v832
  %v849 = vpack.c.b16 %v833, %v833
  %v850 = vpack.c.b16 %v834, %v834
  %v851 = vpack.c.b16 %v835, %v835
  %v852 = vpack.c.b16 %v836, %v836
  %v853 = vpack.c.b16 %v837, %v837
  %v854 = vpack.c.b16 %v838, %v838
  %v855 = vpack.c.b16 %v839, %v839
  %vm872 = vcmask 257024
  %873 = vst.msk [vmem:[%s8] sm:$0xf] %vm872, %v840
  %874 = vst.msk [vmem:[%s8 + $0x4] sm:$0xf] %vm872, %v841
  %875 = vst.msk [vmem:[%s8 + $0x8] sm:$0xf] %vm872, %v842
  %876 = vst.msk [vmem:[%s8 + $0xc] sm:$0xf] %vm872, %v843
  %877 = vst.msk [vmem:[%s8 + $0x10] sm:$0xf] %vm872, %v844
  %878 = vst.msk [vmem:[%s8 + $0x14] sm:$0xf] %vm872, %v845
  %879 = vst.msk [vmem:[%s8 + $0x18] sm:$0xf] %vm872, %v846
  %880 = vst.msk [vmem:[%s8 + $0x1c] sm:$0xf] %vm872, %v847
  %881 = vst.msk [vmem:[%s8 + $0x20] sm:$0xf] %vm872, %v848
  %882 = vst.msk [vmem:[%s8 + $0x24] sm:$0xf] %vm872, %v849
  %883 = vst.msk [vmem:[%s8 + $0x28] sm:$0xf] %vm872, %v850
  %884 = vst.msk [vmem:[%s8 + $0x2c] sm:$0xf] %vm872, %v851
  %885 = vst.msk [vmem:[%s8 + $0x30] sm:$0xf] %vm872, %v852
  %886 = vst.msk [vmem:[%s8 + $0x34] sm:$0xf] %vm872, %v853
  %887 = vst.msk [vmem:[%s8 + $0x38] sm:$0xf] %vm872, %v854
  %888 = vst.msk [vmem:[%s8 + $0x3c] sm:$0xf] %vm872, %v855
  // Predicated region
  $region34: #{tpu_custom_call.1} parent=0 // pred_check
    _
  $region35: #{tpu_custom_call.1} parent=0 // pred_check_branch
    %890 = sbr.rel (0) target = $region37
  $region36: #{tpu_custom_call.1} parent=0 // pred_region
    _
  $region37: #{tpu_custom_call.1} parent=0 // pred_fallthru
    _
  // Predicated region
  $region38: #{tpu_custom_call.1} parent=0 // pred_check
    _
  $region39: #{tpu_custom_call.1} parent=0 // pred_check_branch
    %892 = sbr.rel (0) target = $region41
  $region40: #{tpu_custom_call.1} parent=0 // pred_region
    _
  $region41: #{tpu_custom_call.1} parent=0 // pred_fallthru
    _
  // Predicated region
  $region42: #{tpu_custom_call.1} parent=0 // pred_check
    _
  $region43: #{tpu_custom_call.1} parent=0 // pred_check_branch
    %894 = sbr.rel (0) target = $region45
  $region44: #{tpu_custom_call.1} parent=0 // pred_region
    _
  $region45: #{tpu_custom_call.1} parent=0 // pred_fallthru
    _
  // Predicated region
  $region46: #{tpu_custom_call.1} parent=0 // pred_check
    _
  $region47: #{tpu_custom_call.1} parent=0 // pred_check_branch
    %896 = sbr.rel (0) target = $region49
  $region48: #{tpu_custom_call.1} parent=0 // pred_region
    _
  $region49: #{tpu_custom_call.1} parent=0 // pred_fallthru
    _

</llo_original>
